<compile_context>
chip_gen: v5e
topology: v5e:2x2
jax: 0.10.0
libtpu: 0.0.40
codegen_flags: <defaults>
</compile_context>

<pallas_src>
import jax
import jax.numpy as jnp
from jax.experimental import pallas as pl
from jax.experimental.pallas import tpu as pltpu


def _round_up(x, m):
    return (x + m - 1) // m * m


def fused_fc_kernel(x_ref, w_ref, b_ref, y_ref):
    # One fused MXU matmul over the concatenated (padded) weight, then a single
    # lane-dense bias add that hides under the matmul on spare VALU slots.
    y = jnp.dot(x_ref[...], w_ref[...], preferred_element_type=jnp.float32)
    y = y + b_ref[...]
    y_ref[...] = y.astype(y_ref.dtype)


def parallel_fc(x, w1, b1, w2, b2):
    """x: (B, n_in); w1: (n_in, n_1); b1: (n_1,); w2: (n_in, n_2); b2: (n_2,).

    Returns (y1, y2) with y1 = x @ w1 + b1, y2 = x @ w2 + b2
    (same semantics as Parallel_fc.forward; X.clone() is a no-op here).
    """
    B, n_in = x.shape
    n_1 = w1.shape[1]
    n_2 = w2.shape[1]
    n_out = n_1 + n_2
    itemsize = x.dtype.itemsize

    # --- Fuse the two linears into one matmul. ---
    w = jnp.concatenate([w1, w2], axis=1)   # (n_in, n_out)
    b = jnp.concatenate([b1, b2], axis=0)   # (n_out,)

    # --- Lane-dense output: pad fused N to a multiple of 128 (minimal padding),
    #     then pick the largest N tile (128 or 256) that evenly divides it. ---
    n_pad = _round_up(n_out, 128)
    tn = 256 if (n_pad % 256 == 0) else 128
    if n_pad != n_out:
        w = jnp.pad(w, ((0, 0), (0, n_pad - n_out)))   # zero cols -> zero output
        b = jnp.pad(b, (0, n_pad - n_out))
    b2d = b.reshape(1, n_pad)

    # --- Tile the batch dim; keep block shapes (8,128)-legal and VMEM-friendly. ---
    tm = min(_round_up(B, 8), 256)
    # Shrink the batch tile if the resident (tm, n_in) x-tile (double-buffered)
    # would eat too much VMEM for large n_in.
    x_tile_budget = 4 * 1024 * 1024  # 4 MiB per x tile
    while tm > 8 and tm * n_in * itemsize > x_tile_budget:
        tm //= 2
    tm = max(_round_up(tm, 8), 8)
    b_pad = _round_up(B, tm)
    if b_pad != B:
        x = jnp.pad(x, ((0, b_pad - B), (0, 0)))

    grid = (b_pad // tm, n_pad // tn)

    cost = pl.CostEstimate(
        flops=2 * b_pad * n_in * n_pad,
        transcendentals=0,
        bytes_accessed=(
            b_pad * n_in * itemsize          # x
            + n_in * n_pad * itemsize        # fused w
            + n_pad * itemsize               # fused b
            + b_pad * n_pad * itemsize       # y slab
        ),
    )

    y = pl.pallas_call(
        fused_fc_kernel,
        out_shape=jax.ShapeDtypeStruct((b_pad, n_pad), x.dtype),
        grid_spec=pltpu.PrefetchScalarGridSpec(
            num_scalar_prefetch=0,
            grid=grid,
            in_specs=[
                pl.BlockSpec((tm, n_in), lambda i, j: (i, 0)),   # x row tile (constant over j)
                pl.BlockSpec((n_in, tn), lambda i, j: (0, j)),   # fused W col tile
                pl.BlockSpec((1, tn), lambda i, j: (0, j)),      # fused bias tile
            ],
            out_specs=pl.BlockSpec((tm, tn), lambda i, j: (i, j)),
        ),
        compiler_params=pltpu.CompilerParams(
            # Both axes independent -> shard across TensorCores on v7x megacore.
            dimension_semantics=("parallel", "parallel"),
        ),
        cost_estimate=cost,
    )(x, w, b2d)

    # Slice the two logical outputs (and drop any batch / lane padding).
    y1 = y[:B, :n_1]
    y2 = y[:B, n_1:n_out]
    return y1, y2


def init_parallel_fc_params(key, n_in, n_1, n_2, dtype=jnp.float32):
    """Deterministic init mimicking torch.nn.Linear default (U(-k, k), k=1/sqrt(n_in))."""
    k = 1.0 / jnp.sqrt(jnp.array(n_in, dtype=jnp.float32))
    k1, k2, k3, k4 = jax.random.split(key, 4)
    # Stored already transposed: (n_in, n_out), equivalent to torch weight.T
    w1 = jax.random.uniform(k1, (n_in, n_1), dtype, -k, k)
    b1 = jax.random.uniform(k2, (n_1,), dtype, -k, k)
    w2 = jax.random.uniform(k3, (n_in, n_2), dtype, -k, k)
    b2 = jax.random.uniform(k4, (n_2,), dtype, -k, k)
    return w1, b1, w2, b2


if __name__ == "__main__":
    key = jax.random.PRNGKey(0)
    kx, kp = jax.random.split(key)

    B, n_in, n_1, n_2 = 8, 32, 16, 24
    x = jax.random.normal(kx, (B, n_in), dtype=jnp.float32)
    w1, b1, w2, b2 = init_parallel_fc_params(kp, n_in, n_1, n_2)

    y1, y2 = parallel_fc(x, w1, b1, w2, b2)
    jax.block_until_ready((y1, y2))

    # Reference check against plain JAX (same semantics as the PyTorch module).
    y1_ref = x @ w1 + b1
    y2_ref = x @ w2 + b2
    assert y1.shape == (B, n_1) and y2.shape == (B, n_2)
    assert jnp.allclose(y1, y1_ref, atol=1e-5, rtol=1e-5)
    assert jnp.allclose(y2, y2_ref, atol=1e-5, rtol=1e-5)

    print("KERNEL_OK")
</pallas_src>

<mosaic_0001>
module attributes {stable_mosaic.version = 11 : i64} {
  func.func @fused_fc_kernel(%arg0: i32, %arg1: i32, %arg2: memref<8x32xf32, #tpu.memory_space<vmem>>, %arg3: memref<32x128xf32, #tpu.memory_space<vmem>>, %arg4: memref<1x128xf32, #tpu.memory_space<vmem>>, %arg5: memref<8x128xf32, #tpu.memory_space<vmem>>) attributes {dimension_semantics = [#tpu.dimension_semantics<parallel>, #tpu.dimension_semantics<parallel>], iteration_bounds = array<i64: 1, 1>, scalar_prefetch = 0 : i64, scratch_operands = 0 : i64, tpu.core_type = #tpu.core_type<tc>, window_params = [{transform_indices = @transform_0, window_bounds = array<i64: 8, 32>}, {transform_indices = @transform_1, window_bounds = array<i64: 32, 128>}, {transform_indices = @transform_2, window_bounds = array<i64: 1, 128>}, {transform_indices = @transform_3, window_bounds = array<i64: 8, 128>}]} {
    %c0 = arith.constant 0 : index
    %c0_0 = arith.constant 0 : index
    %0 = vector.load %arg2[%c0, %c0_0] : memref<8x32xf32, #tpu.memory_space<vmem>>, vector<8x32xf32>
    %c0_1 = arith.constant 0 : index
    %c0_2 = arith.constant 0 : index
    %1 = vector.load %arg3[%c0_1, %c0_2] : memref<32x128xf32, #tpu.memory_space<vmem>>, vector<32x128xf32>
    %cst = arith.constant dense<0.000000e+00> : vector<8x128xf32>
    %2 = tpu.matmul %0, %1, %cst {dimension_numbers = #tpu.dot_dimension_numbers<[1], [0], [0], [1], [0, 0, 1, 1], [], []>} : vector<8x32xf32>, vector<32x128xf32>, vector<8x128xf32> -> vector<8x128xf32>
    %c0_3 = arith.constant 0 : index
    %c0_4 = arith.constant 0 : index
    %3 = vector.load %arg4[%c0_3, %c0_4] : memref<1x128xf32, #tpu.memory_space<vmem>>, vector<1x128xf32>
    %4 = vector.broadcast %3 : vector<1x128xf32> to vector<8x128xf32>
    %5 = arith.addf %2, %4 : vector<8x128xf32>
    %c0_5 = arith.constant 0 : index
    %c0_6 = arith.constant 0 : index
    %6 = vector.load %arg5[%c0_5, %c0_6] : memref<8x128xf32, #tpu.memory_space<vmem>>, vector<8x128xf32>
    tpu.vector_store %arg5[%c0_5, %c0_6], %5 {strides = array<i32>} : memref<8x128xf32, #tpu.memory_space<vmem>>, vector<8x128xf32>,
    return
  }
  func.func @transform_0(%arg0: i32, %arg1: i32) -> (i32, i32) {
    %c0_i32 = arith.constant 0 : i32
    %c0_i32_0 = arith.constant 0 : i32
    return %arg0, %c0_i32 : i32, i32
  }
  func.func @transform_1(%arg0: i32, %arg1: i32) -> (i32, i32) {
    %c0_i32 = arith.constant 0 : i32
    %c0_i32_0 = arith.constant 0 : i32
    return %c0_i32, %arg1 : i32, i32
  }
  func.func @transform_2(%arg0: i32, %arg1: i32) -> (i32, i32) {
    %c0_i32 = arith.constant 0 : i32
    %c0_i32_0 = arith.constant 0 : i32
    return %c0_i32, %arg1 : i32, i32
  }
  func.func @transform_3(%arg0: i32, %arg1: i32) -> (i32, i32) {
    %c0_i32 = arith.constant 0 : i32
    return %arg0, %arg1 : i32, i32
  }
}

</mosaic_0001>

<llo_original>
// kernel: tpu_custom_call.1
$region0: #{tpu_custom_call.1}
  #allocation0 [shape = 'u32[]', space=smem, size = 0x4, offset = 0x4, fixed_abs, tag = 'smem constant byte address 0x4 - core index']
  #allocation1 [shape = 'u32[72,128]{1,0:T(1,128)}', space=vmem, size = 0x9000, scoped, tag = 'internal scratch']
  %s0 = inlined_call_operand.hbm [shape: f32[8,32], index: 0, kind: input, shape index: {}]
  %s1 = inlined_call_operand.hbm [shape: f32[32,128], index: 1, kind: input, shape index: {}]
  %s2 = inlined_call_operand.vmem [shape: f32[1,128], index: 2, kind: input, shape index: {}]
  %s3 = inlined_call_operand.hbm [shape: f32[8,128], index: 3, kind: output, shape index: {}]
  %s4 = sld [smem:[#allocation0]]
  $region30: #{tpu_custom_call.1} parent=0
    _
  %s6 = ssub.s32 1, %s4
  %s7 = scalar_select 0, %s6, %s4
  $region1: #{tpu_custom_call.1} parent=0
    #allocation2 [shape = 'u8[4096]{0}', space=vmem, size = 0x1000, scoped, tag = 'input window, operand 0, single buffered']
    #allocation3 [shape = 's32[1]{0}', space=sflag, size = 0x4, scoped, tag = 'scoped memory for tpu_custom_call.1']
    #allocation4 [shape = 's32[1]{0}', space=sflag, size = 0x4, scoped, tag = 'scoped memory for tpu_custom_call.1']
    #allocation5 [shape = 'u8[16384]{0}', space=vmem, size = 0x4000, scoped, tag = 'input window, operand 1, single buffered']
    #allocation6 [shape = 's32[1]{0}', space=sflag, size = 0x4, scoped, tag = 'scoped memory for tpu_custom_call.1']
    #allocation7 [shape = 'u8[4096]{0}', space=vmem, size = 0x1000, scoped, tag = 'output window, operand 0, single buffered']
    %8 = vsyncpa [#allocation3], 0
    %9 = vsyncpa [#allocation6], 0
    %10 = vsyncpa [#allocation4], 0
    // Predicated region
    $region2: #{tpu_custom_call.1} parent=1 // pred_check
      _
    $region3: #{tpu_custom_call.1} parent=1 // pred_check_branch
      %12 = sbr.rel (0) target = $region5
    $region4: #{tpu_custom_call.1} parent=1 // pred_region
      %14 = vsyncadd [#allocation3], 0
      %s16 = sshll.u32 %s0, 4
      %s17 = int_to_ptr.hbm [resolvable:$true] %s16
      %s18 = sshll.u32 [#allocation2], 4
      %s19 = int_to_ptr.vmem [resolvable:$true] %s18
      %21 = dma.hbm_to_vmem [thread:$0]  %s17, 128, %s19, [#allocation3]
    $region5: #{tpu_custom_call.1} parent=1 // pred_fallthru
      _
    // Predicated region
    $region6: #{tpu_custom_call.1} parent=1 // pred_check
      _
    $region7: #{tpu_custom_call.1} parent=1 // pred_check_branch
      %23 = sbr.rel (0) target = $region9
    $region8: #{tpu_custom_call.1} parent=1 // pred_region
      %25 = vsyncadd [#allocation6], 0
      %s26 = sshll.u32 %s1, 4
      %s27 = int_to_ptr.hbm [resolvable:$true] %s26
      %s28 = sshll.u32 [#allocation5], 4
      %s29 = int_to_ptr.vmem [resolvable:$true] %s28
      %34 = dma.hbm_to_vmem [thread:$0]  %s27, 512, %s29, [#allocation6], 128, 128, 8
    $region9: #{tpu_custom_call.1} parent=1 // pred_fallthru
      _
    // Predicated region
    $region10: #{tpu_custom_call.1} parent=1 // pred_check
      _
    $region11: #{tpu_custom_call.1} parent=1 // pred_check_branch
      %36 = sbr.rel (0) target = $region13
    $region12: #{tpu_custom_call.1} parent=1 // pred_region
      _
    $region13: #{tpu_custom_call.1} parent=1 // pred_fallthru
      _
    // Predicated region
    $region14: #{tpu_custom_call.1} parent=1 // pred_check
      _
    $region15: #{tpu_custom_call.1} parent=1 // pred_check_branch
      %38 = sbr.rel (0) target = $region17
    $region16: #{tpu_custom_call.1} parent=1 // pred_region
      %40 = dma.done [#allocation3], 128
    $region17: #{tpu_custom_call.1} parent=1 // pred_fallthru
      _
    // Predicated region
    $region18: #{tpu_custom_call.1} parent=1 // pred_check
      _
    $region19: #{tpu_custom_call.1} parent=1 // pred_check_branch
      %42 = sbr.rel (0) target = $region21
    $region20: #{tpu_custom_call.1} parent=1 // pred_region
      %44 = dma.done [#allocation6], 512
    $region21: #{tpu_custom_call.1} parent=1 // pred_fallthru
      _
    %v45 = vld [vmem:[#allocation2] sm:$0xff]
    %v46 = vld [vmem:[#allocation5] sm:$0xff]
    %v47 = vld [vmem:[#allocation5 + $0x8] sm:$0xff]
    %v48 = vld [vmem:[#allocation5 + $0x10] sm:$0xff]
    %v49 = vld [vmem:[#allocation5 + $0x18] sm:$0xff]
    %v50 = vld [vmem:[%s2] sm:$0x1]
    %v52 = vperm.slane %v50, 0
    %vm54 = vcmask 261120
    %v56 = vsel %vm54, %v45, 0
    %58 = vmatpush.msra.mxu0 0.0
    %59 = vmatpush.msra.mxu0 0.0
    %60 = vmatpush.msra.mxu0 0.0
    %61 = vmatpush.msra.mxu0 0.0
    %62 = vmatpush.msra.mxu0 0.0
    %63 = vmatpush.msra.mxu0 0.0
    %64 = vmatpush.msra.mxu0 0.0
    %65 = vmatpush.msra.mxu0 0.0
    %66 = vmatpush.msra.mxu0 0.0
    %67 = vmatpush.msra.mxu0 0.0
    %68 = vmatpush.msra.mxu0 0.0
    %69 = vmatpush.msra.mxu0 0.0
    %70 = vmatpush.msra.mxu0 %v49
    %71 = vmatpush.msra.mxu0 %v48
    %72 = vmatpush.msra.mxu0 %v47
    %73 = vmatpush.msra.mxu0 %v46
    %74 = vmatmul.f32.gmra.mxu0 %v56
    %v75 = vpop.f32.mrf.mxu0
    %v76 = vadd.f32 %v52, %v75
    %77 = vdwg.mxu0
    %78 = vst [vmem:[#allocation7] sm:$0xff] %v76
    // Predicated region
    $region22: #{tpu_custom_call.1} parent=1 // pred_check
      _
    $region23: #{tpu_custom_call.1} parent=1 // pred_check_branch
      %80 = sbr.rel (0) target = $region25
    $region24: #{tpu_custom_call.1} parent=1 // pred_region
      %82 = vsyncadd [#allocation4], 0
      %s84 = sshll.u32 [#allocation7], 4
      %s85 = int_to_ptr.vmem [resolvable:$true] %s84
      %s86 = sshll.u32 %s3, 4
      %s87 = int_to_ptr.hbm [resolvable:$true] %s86
      %89 = dma.vmem_to_hbm [thread:$0]  %s85, 128, %s87, [#allocation4]
    $region25: #{tpu_custom_call.1} parent=1 // pred_fallthru
      _
    // Predicated region
    $region26: #{tpu_custom_call.1} parent=1 // pred_check
      _
    $region27: #{tpu_custom_call.1} parent=1 // pred_check_branch
      %91 = sbr.rel (0) target = $region29
    $region28: #{tpu_custom_call.1} parent=1 // pred_region
      %93 = dma.done [#allocation4], 128
    $region29: #{tpu_custom_call.1} parent=1 // pred_fallthru
      _
    %94 = vsyncpa [#allocation3], 1
    %95 = vsyncpa [#allocation6], 1
    %96 = vsyncpa [#allocation4], 1

</llo_original>
